<compile_context>
chip_gen: v7x
topology: tpu7x:2x2x1
jax: 0.10.0
libtpu: 0.0.40
codegen_flags: <defaults>
</compile_context>

<pallas_src>
import functools

import jax
import jax.numpy as jnp
from jax.experimental import pallas as pl
from jax.experimental.pallas import tpu as pltpu

NUM_FILTERS = 100
F_PAD = 128                 # filters padded to the 128-lane width; padded channels inert
KS = (3, 4, 5)
KMAX = max(KS)
N_CONV = len(KS)


def _round_up(x, m):
    return ((x + m - 1) // m) * m


def cnn_kernel(emb_ref,      # (TB, Lp, D)              bf16, Lp = Lw + KMAX - 1 (zero-padded time)
               w_all_ref,    # (KMAX*D, N_CONV*F_PAD)   bf16, im2col RHS (one column block / conv)
               b_all_ref,    # (N_CONV, F_PAD)          f32
               wlin_ref,     # (N_CONV, F_PAD)          f32, de-interleaved Linear(300,1) weight
               blin_ref,     # (1, 1)                   f32
               out_ref,      # (TB, 1)                  f32
               *, seq_len, win_rows):
    e = emb_ref[...]
    tb, _, d = e.shape
    lw = win_rows                                       # window-start rows (multiple of 8)

    # im2col: row t holds [e[t], e[t+1], ..., e[t+KMAX-1]] -> feature index j*D + d.
    lhs = jnp.concatenate([e[:, j:j + lw, :] for j in range(KMAX)], axis=-1)   # (TB, Lw, KMAX*D)

    # One MXU pass covering all three convs: K = KMAX*D, N = 3*128, f32 accumulation.
    z = jnp.dot(lhs.reshape(tb * lw, KMAX * d), w_all_ref[...],
                preferred_element_type=jnp.float32)
    z = z.reshape(tb, lw, N_CONV * F_PAD)

    t_idx = jax.lax.broadcasted_iota(jnp.int32, (1, lw, 1), 1)

    # Bias + ReLU after the max-pool (exact, see header).  Linear partial products
    # accumulate in a lane-dense (TB, 128) buffer; one cross-lane reduce at the end.
    g = jnp.zeros((tb, F_PAD), jnp.float32)
    for idx, k in enumerate(KS):
        valid = seq_len - k + 1                                   # conv-k output length
        zk = z[:, :, idx * F_PAD:(idx + 1) * F_PAD]               # lane-aligned (128) slice
        zk = jnp.where(t_idx < valid, zk, jnp.float32(-1e30))     # mask invalid window starts
        pooled = jnp.max(zk, axis=1)                              # (TB, F_PAD)
        pooled = jnp.maximum(pooled + b_all_ref[idx:idx + 1, :], 0.0)
        g = g + pooled * wlin_ref[idx:idx + 1, :]

    # TODO(synk): nn.Dropout(p=0.5) is identity in eval mode; train-mode dropout omitted.
    logit = jnp.sum(g, axis=-1, keepdims=True) + blin_ref[...]
    out_ref[...] = jax.nn.sigmoid(logit)


def _pick_batch_tile(batch, lw, lp, d):
    """Batch tile sized against a VMEM activation budget; >=4 grid steps when batch allows."""
    per_row = (lw * N_CONV * F_PAD * 4          # f32 matmul output z
               + 2 * lw * KMAX * d * 2          # bf16 im2col LHS (+ relayout copy)
               + 2 * lp * d * 2)                # double-buffered emb input block
    tb = int((8 << 20) // max(per_row, 1))
    tb = max(8, min(512, (tb // 8) * 8))
    if batch >= 32:                             # >=4 grid steps: 2 per v7x TensorCore
        tb = min(tb, _round_up(max(8, (batch + 3) // 4), 8))
    return min(tb, _round_up(batch, 8))


def cnn_forward(tokens, params):
    """tokens: (B, L) int32 ids.  Returns (B, 1) sigmoid probabilities (eval mode)."""
    B, L = tokens.shape
    D = params['emb'].shape[1]
    assert L >= KMAX, "sequence must be at least as long as the largest conv kernel"

    Lw = _round_up(L, 8)            # window-start rows (multiple of 8 -> free reshape)
    Lp = Lw + KMAX - 1              # emb rows so every length-KMAX window read is in-bounds

    # --- glue (plain JAX): embedding gather + weight re-layout / padding -------------
    # TODO(synk): the gather could be fused in-kernel (scalar-prefetched ids + DMA) to
    # halve activation HBM traffic; kept in the wrapper for lowering simplicity here.
    emb = jnp.take(params['emb'], tokens, axis=0).astype(jnp.bfloat16)        # (B, L, D)
    emb = jnp.pad(emb, ((0, 0), (0, Lp - L), (0, 0)))                         # (B, Lp, D)

    def conv_rhs(w):                 # torch (100, 1, k, D) -> (KMAX*D, F_PAD), rows j*D+d
        k = w.shape[2]
        m = jnp.transpose(w[:, 0, :, :], (1, 2, 0)).reshape(k * D, NUM_FILTERS)
        return jnp.pad(m, ((0, (KMAX - k) * D), (0, F_PAD - NUM_FILTERS)))

    def pad_b(b):
        return jnp.pad(b, (0, F_PAD - NUM_FILTERS)).astype(jnp.float32)

    w_all = jnp.concatenate(
        [conv_rhs(params['conv3_w']),
         conv_rhs(params['conv4_w']),
         conv_rhs(params['conv5_w'])], axis=1).astype(jnp.bfloat16)     # (KMAX*D, 3*F_PAD)
    b_all = jnp.stack([pad_b(params['conv3_b']),
                       pad_b(params['conv4_b']),
                       pad_b(params['conv5_b'])], axis=0)               # (3, F_PAD)

    # torch cat((x1,x2,x3), -1).view(B,300) interleaves (p3[c], p4[c], p5[c]) per channel;
    # de-interleave the Linear(300,1) weight so row m multiplies conv m+3.
    wl_flat = params['lin_w'][0]
    wlin = jnp.stack([jnp.pad(wl_flat[m::3], (0, F_PAD - NUM_FILTERS))
                      for m in range(N_CONV)], axis=0).astype(jnp.float32)    # (3, F_PAD)
    blin = params['lin_b'].reshape(1, 1).astype(jnp.float32)

    TB = _pick_batch_tile(B, Lw, Lp, D)
    G = pl.cdiv(B, TB)
    Bp = G * TB
    if Bp != B:                      # pad batch so every block is fully in-bounds
        emb = jnp.pad(emb, ((0, Bp - B), (0, 0), (0, 0)))

    kernel = functools.partial(cnn_kernel, seq_len=L, win_rows=Lw)
    out = pl.pallas_call(
        kernel,
        out_shape=jax.ShapeDtypeStruct((Bp, 1), jnp.float32),
        grid=(G,),
        in_specs=[
            pl.BlockSpec((TB, Lp, D), lambda i: (i, 0, 0)),                  # pipelined emb tile
            # constant index maps -> weights stay VMEM-resident across grid steps
            # TODO(synk): pipeline_mode=pl.Buffered(1) would drop their second pipeline buffer.
            pl.BlockSpec((KMAX * D, N_CONV * F_PAD), lambda i: (0, 0)),
            pl.BlockSpec((N_CONV, F_PAD), lambda i: (0, 0)),
            pl.BlockSpec((N_CONV, F_PAD), lambda i: (0, 0)),
            pl.BlockSpec((1, 1), lambda i: (0, 0)),
        ],
        # NOTE: logits output stays (TB, 1); the grid is short, so the masked-store
        # overhead is negligible and the per-row relayout of a lane-dense variant is avoided.
        out_specs=pl.BlockSpec((TB, 1), lambda i: (i, 0)),
        compiler_params=pltpu.CompilerParams(
            dimension_semantics=("parallel",),
            vmem_limit_bytes=32 * 1024 * 1024),
    )(emb, w_all, b_all, wlin, blin)
    return out[:B]


def ref_forward(tokens, params):
    """Pure-JAX f32 reference mirroring the torch forward exactly."""
    B, L = tokens.shape
    emb = params['emb'][tokens]                       # (B, L, D)

    def conv(w, b, k):
        P = L - k + 1
        cols = [jnp.einsum('bld,old->bo', emb[:, t:t + k, :], w[:, 0])
                for t in range(P)]
        out = jnp.stack(cols, axis=-1) + b[None, :, None]   # (B, 100, P)
        return jax.nn.relu(out)

    pooled = []
    for k, (wk, bk) in zip((3, 4, 5),
                           ((params['conv3_w'], params['conv3_b']),
                            (params['conv4_w'], params['conv4_b']),
                            (params['conv5_w'], params['conv5_b']))):
        c = conv(wk, bk, k)
        pooled.append(jax.nn.relu(jnp.max(c, axis=-1)))      # (B, 100)
    feat = jnp.stack(pooled, axis=-1).reshape(B, 3 * NUM_FILTERS)  # interleaved (B, 300)
    logit = feat @ params['lin_w'].T + params['lin_b']
    return jax.nn.sigmoid(logit)


def init_params(key, vocab_size, input_size):
    ks = jax.random.split(key, 9)
    s = 0.1
    return {
        'emb':     jax.random.normal(ks[0], (vocab_size, input_size), jnp.float32) * s,
        'conv3_w': jax.random.normal(ks[1], (NUM_FILTERS, 1, 3, input_size), jnp.float32) * s,
        'conv3_b': jax.random.normal(ks[2], (NUM_FILTERS,), jnp.float32) * s,
        'conv4_w': jax.random.normal(ks[3], (NUM_FILTERS, 1, 4, input_size), jnp.float32) * s,
        'conv4_b': jax.random.normal(ks[4], (NUM_FILTERS,), jnp.float32) * s,
        'conv5_w': jax.random.normal(ks[5], (NUM_FILTERS, 1, 5, input_size), jnp.float32) * s,
        'conv5_b': jax.random.normal(ks[6], (NUM_FILTERS,), jnp.float32) * s,
        'lin_w':   jax.random.normal(ks[7], (1, 3 * NUM_FILTERS), jnp.float32) * s,
        'lin_b':   jax.random.normal(ks[8], (1,), jnp.float32) * s,
    }


if __name__ == "__main__":
    batch, vocab_size, length, input_size = 2, 50, 8, 32

    key = jax.random.PRNGKey(0)
    k_tok, k_par, k_tok2 = jax.random.split(key, 3)
    params = init_params(k_par, vocab_size, input_size)

    tokens = jax.random.randint(k_tok, (batch, length), 0, vocab_size, dtype=jnp.int32)
    out = jax.block_until_ready(cnn_forward(tokens, params))
    ref = jax.block_until_ready(ref_forward(tokens, params))
    assert out.shape == (batch, 1), out.shape
    # bf16 inputs (f32 accumulation) -> allow small drift vs the f32 reference.
    assert jnp.allclose(out, ref, atol=2e-3, rtol=2e-3), (out, ref)

    # Second config: exercises a multi-step grid + batch padding path.
    tokens2 = jax.random.randint(k_tok2, (40, length), 0, vocab_size, dtype=jnp.int32)
    out2 = jax.block_until_ready(cnn_forward(tokens2, params))
    ref2 = jax.block_until_ready(ref_forward(tokens2, params))
    assert out2.shape == (40, 1), out2.shape
    assert jnp.allclose(out2, ref2, atol=2e-3, rtol=2e-3), (out2, ref2)

    print("KERNEL_OK")
</pallas_src>

<mosaic_0001>
module attributes {stable_mosaic.version = 11 : i64} {
  func.func @cnn_kernel(%arg0: i32, %arg1: memref<8x12x32xbf16, #tpu.memory_space<vmem>>, %arg2: memref<160x384xbf16, #tpu.memory_space<vmem>>, %arg3: memref<3x128xf32, #tpu.memory_space<vmem>>, %arg4: memref<3x128xf32, #tpu.memory_space<vmem>>, %arg5: memref<1x1xf32, #tpu.memory_space<vmem>>, %arg6: memref<8x1xf32, #tpu.memory_space<vmem>>) attributes {dimension_semantics = [#tpu.dimension_semantics<parallel>], iteration_bounds = array<i64: 1>, scalar_prefetch = 0 : i64, scratch_operands = 0 : i64, tpu.core_type = #tpu.core_type<tc>, window_params = [{transform_indices = @transform_0, window_bounds = array<i64: 8, 12, 32>}, {pipeline_mode = #tpu.pipeline_mode<synchronous>, transform_indices = @transform_1, window_bounds = array<i64: 160, 384>}, {pipeline_mode = #tpu.pipeline_mode<synchronous>, transform_indices = @transform_2, window_bounds = array<i64: 3, 128>}, {pipeline_mode = #tpu.pipeline_mode<synchronous>, transform_indices = @transform_3, window_bounds = array<i64: 3, 128>}, {pipeline_mode = #tpu.pipeline_mode<synchronous>, transform_indices = @transform_4, window_bounds = array<i64: 1, 1>}, {transform_indices = @transform_5, window_bounds = array<i64: 8, 1>}]} {
    %c0 = arith.constant 0 : index
    %c0_0 = arith.constant 0 : index
    %c0_1 = arith.constant 0 : index
    %0 = vector.load %arg1[%c0, %c0_0, %c0_1] : memref<8x12x32xbf16, #tpu.memory_space<vmem>>, vector<8x12x32xbf16>
    %1 = vector.extract_strided_slice %0 {offsets = [0, 0, 0], sizes = [8, 8, 32], strides = [1, 1, 1]} : vector<8x12x32xbf16> to vector<8x8x32xbf16>
    %2 = vector.extract_strided_slice %0 {offsets = [0, 1, 0], sizes = [8, 8, 32], strides = [1, 1, 1]} : vector<8x12x32xbf16> to vector<8x8x32xbf16>
    %3 = vector.extract_strided_slice %0 {offsets = [0, 2, 0], sizes = [8, 8, 32], strides = [1, 1, 1]} : vector<8x12x32xbf16> to vector<8x8x32xbf16>
    %4 = vector.extract_strided_slice %0 {offsets = [0, 3, 0], sizes = [8, 8, 32], strides = [1, 1, 1]} : vector<8x12x32xbf16> to vector<8x8x32xbf16>
    %5 = vector.extract_strided_slice %0 {offsets = [0, 4, 0], sizes = [8, 8, 32], strides = [1, 1, 1]} : vector<8x12x32xbf16> to vector<8x8x32xbf16>
    %6 = tpu.concatenate %1, %2, %3, %4, %5 in 2 : vector<8x8x32xbf16>, vector<8x8x32xbf16>, vector<8x8x32xbf16>, vector<8x8x32xbf16>, vector<8x8x32xbf16> -> vector<8x8x160xbf16>
    %7 = vector.shape_cast %6 : vector<8x8x160xbf16> to vector<64x160xbf16>
    %c0_2 = arith.constant 0 : index
    %c0_3 = arith.constant 0 : index
    %8 = vector.load %arg2[%c0_2, %c0_3] : memref<160x384xbf16, #tpu.memory_space<vmem>>, vector<160x384xbf16>
    %cst = arith.constant dense<0.000000e+00> : vector<64x384xf32>
    %9 = tpu.matmul %7, %8, %cst {dimension_numbers = #tpu.dot_dimension_numbers<[1], [0], [0], [1], [0, 0, 1, 1], [], []>} : vector<64x160xbf16>, vector<160x384xbf16>, vector<64x384xf32> -> vector<64x384xf32>
    %10 = vector.shape_cast %9 : vector<64x384xf32> to vector<8x8x384xf32>
    %11 = tpu.iota {dimensions = array<i32: 1>} : vector<1x8x1xi32>
    %cst_4 = arith.constant 0.000000e+00 : f32
    %12 = vector.broadcast %cst_4 : f32 to vector<8x128xf32>
    %13 = vector.extract_strided_slice %10 {offsets = [0, 0, 0], sizes = [8, 8, 128], strides = [1, 1, 1]} : vector<8x8x384xf32> to vector<8x8x128xf32>
    %c6_i32 = arith.constant 6 : i32
    %14 = vector.broadcast %c6_i32 : i32 to vector<1x8x1xi32>
    %15 = arith.cmpi slt, %11, %14 : vector<1x8x1xi32>
    %cst_5 = arith.constant -1.000000e+30 : f32
    %16 = vector.shape_cast %15 : vector<1x8x1xi1> to vector<1x8x1xi1>
    %17 = vector.broadcast %16 : vector<1x8x1xi1> to vector<8x8x128xi1>
    %18 = vector.broadcast %cst_5 : f32 to vector<8x8x128xf32>
    %19 = arith.select %17, %13, %18 : vector<8x8x128xi1>, vector<8x8x128xf32>
    %cst_6 = arith.constant dense<0xFF800000> : vector<8x128xf32>
    %20 = vector.multi_reduction <maximumf>, %19, %cst_6 [1] : vector<8x8x128xf32> to vector<8x128xf32>
    %c0_7 = arith.constant 0 : index
    %c0_8 = arith.constant 0 : index
    %21 = vector.load %arg3[%c0_7, %c0_8] : memref<3x128xf32, #tpu.memory_space<vmem>>, vector<1x128xf32>
    %22 = vector.broadcast %21 : vector<1x128xf32> to vector<8x128xf32>
    %23 = arith.addf %20, %22 : vector<8x128xf32>
    %cst_9 = arith.constant 0.000000e+00 : f32
    %24 = vector.broadcast %cst_9 : f32 to vector<8x128xf32>
    %25 = arith.maximumf %23, %24 : vector<8x128xf32>
    %c0_10 = arith.constant 0 : index
    %c0_11 = arith.constant 0 : index
    %26 = vector.load %arg4[%c0_10, %c0_11] : memref<3x128xf32, #tpu.memory_space<vmem>>, vector<1x128xf32>
    %27 = vector.broadcast %26 : vector<1x128xf32> to vector<8x128xf32>
    %28 = arith.mulf %25, %27 : vector<8x128xf32>
    %29 = arith.addf %12, %28 : vector<8x128xf32>
    %30 = vector.extract_strided_slice %10 {offsets = [0, 0, 128], sizes = [8, 8, 128], strides = [1, 1, 1]} : vector<8x8x384xf32> to vector<8x8x128xf32>
    %c5_i32 = arith.constant 5 : i32
    %31 = vector.broadcast %c5_i32 : i32 to vector<1x8x1xi32>
    %32 = arith.cmpi slt, %11, %31 : vector<1x8x1xi32>
    %cst_12 = arith.constant -1.000000e+30 : f32
    %33 = vector.shape_cast %32 : vector<1x8x1xi1> to vector<1x8x1xi1>
    %34 = vector.broadcast %33 : vector<1x8x1xi1> to vector<8x8x128xi1>
    %35 = vector.broadcast %cst_12 : f32 to vector<8x8x128xf32>
    %36 = arith.select %34, %30, %35 : vector<8x8x128xi1>, vector<8x8x128xf32>
    %cst_13 = arith.constant dense<0xFF800000> : vector<8x128xf32>
    %37 = vector.multi_reduction <maximumf>, %36, %cst_13 [1] : vector<8x8x128xf32> to vector<8x128xf32>
    %c1 = arith.constant 1 : index
    %c0_14 = arith.constant 0 : index
    %38 = vector.load %arg3[%c1, %c0_14] : memref<3x128xf32, #tpu.memory_space<vmem>>, vector<1x128xf32>
    %39 = vector.broadcast %38 : vector<1x128xf32> to vector<8x128xf32>
    %40 = arith.addf %37, %39 : vector<8x128xf32>
    %cst_15 = arith.constant 0.000000e+00 : f32
    %41 = vector.broadcast %cst_15 : f32 to vector<8x128xf32>
    %42 = arith.maximumf %40, %41 : vector<8x128xf32>
    %c1_16 = arith.constant 1 : index
    %c0_17 = arith.constant 0 : index
    %43 = vector.load %arg4[%c1_16, %c0_17] : memref<3x128xf32, #tpu.memory_space<vmem>>, vector<1x128xf32>
    %44 = vector.broadcast %43 : vector<1x128xf32> to vector<8x128xf32>
    %45 = arith.mulf %42, %44 : vector<8x128xf32>
    %46 = arith.addf %29, %45 : vector<8x128xf32>
    %47 = vector.extract_strided_slice %10 {offsets = [0, 0, 256], sizes = [8, 8, 128], strides = [1, 1, 1]} : vector<8x8x384xf32> to vector<8x8x128xf32>
    %c4_i32 = arith.constant 4 : i32
    %48 = vector.broadcast %c4_i32 : i32 to vector<1x8x1xi32>
    %49 = arith.cmpi slt, %11, %48 : vector<1x8x1xi32>
    %cst_18 = arith.constant -1.000000e+30 : f32
    %50 = vector.shape_cast %49 : vector<1x8x1xi1> to vector<1x8x1xi1>
    %51 = vector.broadcast %50 : vector<1x8x1xi1> to vector<8x8x128xi1>
    %52 = vector.broadcast %cst_18 : f32 to vector<8x8x128xf32>
    %53 = arith.select %51, %47, %52 : vector<8x8x128xi1>, vector<8x8x128xf32>
    %cst_19 = arith.constant dense<0xFF800000> : vector<8x128xf32>
    %54 = vector.multi_reduction <maximumf>, %53, %cst_19 [1] : vector<8x8x128xf32> to vector<8x128xf32>
    %c2 = arith.constant 2 : index
    %c0_20 = arith.constant 0 : index
    %55 = vector.load %arg3[%c2, %c0_20] : memref<3x128xf32, #tpu.memory_space<vmem>>, vector<1x128xf32>
    %56 = vector.broadcast %55 : vector<1x128xf32> to vector<8x128xf32>
    %57 = arith.addf %54, %56 : vector<8x128xf32>
    %cst_21 = arith.constant 0.000000e+00 : f32
    %58 = vector.broadcast %cst_21 : f32 to vector<8x128xf32>
    %59 = arith.maximumf %57, %58 : vector<8x128xf32>
    %c2_22 = arith.constant 2 : index
    %c0_23 = arith.constant 0 : index
    %60 = vector.load %arg4[%c2_22, %c0_23] : memref<3x128xf32, #tpu.memory_space<vmem>>, vector<1x128xf32>
    %61 = vector.broadcast %60 : vector<1x128xf32> to vector<8x128xf32>
    %62 = arith.mulf %59, %61 : vector<8x128xf32>
    %63 = arith.addf %46, %62 : vector<8x128xf32>
    %cst_24 = arith.constant dense<0.000000e+00> : vector<8xf32>
    %64 = vector.multi_reduction <add>, %63, %cst_24 [1] : vector<8x128xf32> to vector<8xf32>
    %65 = vector.shape_cast %64 : vector<8xf32> to vector<8x1xf32>
    %c0_25 = arith.constant 0 : index
    %c0_26 = arith.constant 0 : index
    %66 = vector.load %arg5[%c0_25, %c0_26] : memref<1x1xf32, #tpu.memory_space<vmem>>, vector<1x1xf32>
    %67 = vector.broadcast %66 : vector<1x1xf32> to vector<8x1xf32>
    %68 = arith.addf %65, %67 : vector<8x1xf32>
    %69 = arith.negf %68 : vector<8x1xf32>
    %70 = math.exp %69 : vector<8x1xf32>
    %cst_27 = arith.constant 1.000000e+00 : f32
    %71 = vector.broadcast %cst_27 : f32 to vector<8x1xf32>
    %72 = arith.addf %71, %70 : vector<8x1xf32>
    %73 = arith.divf %71, %72 : vector<8x1xf32>
    %c0_28 = arith.constant 0 : index
    %c0_29 = arith.constant 0 : index
    %74 = vector.load %arg6[%c0_28, %c0_29] : memref<8x1xf32, #tpu.memory_space<vmem>>, vector<8x1xf32>
    tpu.vector_store %arg6[%c0_28, %c0_29], %73 {strides = array<i32>} : memref<8x1xf32, #tpu.memory_space<vmem>>, vector<8x1xf32>,
    return
  }
  func.func @transform_0(%arg0: i32) -> (i32, i32, i32) {
    %c0_i32 = arith.constant 0 : i32
    %c0_i32_0 = arith.constant 0 : i32
    %c0_i32_1 = arith.constant 0 : i32
    return %arg0, %c0_i32, %c0_i32_0 : i32, i32, i32
  }
  func.func @transform_1(%arg0: i32) -> (i32, i32) {
    %c0_i32 = arith.constant 0 : i32
    %c0_i32_0 = arith.constant 0 : i32
    %c0_i32_1 = arith.constant 0 : i32
    return %c0_i32, %c0_i32_0 : i32, i32
  }
  func.func @transform_2(%arg0: i32) -> (i32, i32) {
    %c0_i32 = arith.constant 0 : i32
    %c0_i32_0 = arith.constant 0 : i32
    %c0_i32_1 = arith.constant 0 : i32
    return %c0_i32, %c0_i32_0 : i32, i32
  }
  func.func @transform_3(%arg0: i32) -> (i32, i32) {
    %c0_i32 = arith.constant 0 : i32
    %c0_i32_0 = arith.constant 0 : i32
    %c0_i32_1 = arith.constant 0 : i32
    return %c0_i32, %c0_i32_0 : i32, i32
  }
  func.func @transform_4(%arg0: i32) -> (i32, i32) {
    %c0_i32 = arith.constant 0 : i32
    %c0_i32_0 = arith.constant 0 : i32
    %c0_i32_1 = arith.constant 0 : i32
    return %c0_i32, %c0_i32_0 : i32, i32
  }
  func.func @transform_5(%arg0: i32) -> (i32, i32) {
    %c0_i32 = arith.constant 0 : i32
    %c0_i32_0 = arith.constant 0 : i32
    return %arg0, %c0_i32 : i32, i32
  }
}

</mosaic_0001>

<llo_original>
// kernel: tpu_custom_call.1
$region0: #{tpu_custom_call.1}
  #allocation0 [shape = 'u32[]', space=smem, size = 0x4, offset = 0x4, fixed_abs, tag = 'smem constant byte address 0x4 - core index']
  #allocation1 [shape = 'u32[144,128]{1,0:T(1,128)}', space=vmem, size = 0x12000, scoped, tag = 'internal scratch']
  #allocation2 [shape = 'f32[1,1]{1,0:T(1,128)S(1)}', space=vmem, size = 0x200, scoped, tag = 'scoped memory for tpu_custom_call.1']
  %s0 = inlined_call_operand.vmem [shape: bf16[8,12,32], index: 0, kind: input, shape index: {}]
  %s1 = inlined_call_operand.hbm [shape: bf16[160,384], index: 1, kind: input, shape index: {}]
  %s2 = inlined_call_operand.vmem [shape: f32[3,128], index: 2, kind: input, shape index: {}]
  %s3 = inlined_call_operand.vmem [shape: f32[3,128], index: 3, kind: input, shape index: {}]
  %s4 = inlined_call_operand.<no memory space> [shape: f32[1,1], index: 4, kind: input, shape index: {}]
  %s5 = inlined_call_operand.vmem [shape: f32[8,1], index: 5, kind: output, shape index: {}]
  %s6 = sld [smem:[#allocation0]]
  $region34: #{tpu_custom_call.1} parent=0
    _
  %s8 = ssub.s32 1, %s6
  %s9 = scalar_select 0, %s8, %s6
  %v10 = vstv %s4
  %11 = vst [vmem:[#allocation2] sm:$0x1] %v10
  $region1: #{tpu_custom_call.1} parent=0
    #allocation3 [shape = 'u8[122880]{0}', space=vmem, size = 0x1e000, scoped, tag = 'input window, operand 1, single buffered']
    #allocation4 [shape = 's32[1]{0}', space=sflag, size = 0x4, scoped, tag = 'scoped memory for tpu_custom_call.1']
    %12 = vsyncpa [#allocation4], 0
    // Predicated region
    $region2: #{tpu_custom_call.1} parent=1 // pred_check
      _
    $region3: #{tpu_custom_call.1} parent=1 // pred_check_branch
      %14 = sbr.rel (0) target = $region5
    $region4: #{tpu_custom_call.1} parent=1 // pred_region
      _
    $region5: #{tpu_custom_call.1} parent=1 // pred_fallthru
      _
    // Predicated region
    $region6: #{tpu_custom_call.1} parent=1 // pred_check
      _
    $region7: #{tpu_custom_call.1} parent=1 // pred_check_branch
      %16 = sbr.rel (0) target = $region9
    $region8: #{tpu_custom_call.1} parent=1 // pred_region
      %s18 = ssub.s32 3840, 3840
      %19 = vsyncadd [#allocation4], %s18
      %s20 = sshll.u32 [#allocation3], 4
      %s21 = int_to_ptr.vmem [resolvable:$true] %s20
      %26 = dma.hbm_to_vmem [thread:$0]  %s1, 3840, %s21, [#allocation4], 192, 192, 12
    $region9: #{tpu_custom_call.1} parent=1 // pred_fallthru
      _
    // Predicated region
    $region10: #{tpu_custom_call.1} parent=1 // pred_check
      _
    $region11: #{tpu_custom_call.1} parent=1 // pred_check_branch
      %28 = sbr.rel (0) target = $region13
    $region12: #{tpu_custom_call.1} parent=1 // pred_region
      _
    $region13: #{tpu_custom_call.1} parent=1 // pred_fallthru
      _
    // Predicated region
    $region14: #{tpu_custom_call.1} parent=1 // pred_check
      _
    $region15: #{tpu_custom_call.1} parent=1 // pred_check_branch
      %30 = sbr.rel (0) target = $region17
    $region16: #{tpu_custom_call.1} parent=1 // pred_region
      _
    $region17: #{tpu_custom_call.1} parent=1 // pred_fallthru
      _
    // Predicated region
    $region18: #{tpu_custom_call.1} parent=1 // pred_check
      _
    $region19: #{tpu_custom_call.1} parent=1 // pred_check_branch
      %32 = sbr.rel (0) target = $region21
    $region20: #{tpu_custom_call.1} parent=1 // pred_region
      _
    $region21: #{tpu_custom_call.1} parent=1 // pred_fallthru
      _
    // Predicated region
    $region22: #{tpu_custom_call.1} parent=1 // pred_check
      _
    $region23: #{tpu_custom_call.1} parent=1 // pred_check_branch
      %34 = sbr.rel (0) target = $region25
    $region24: #{tpu_custom_call.1} parent=1 // pred_region
      %35 = dma.done [#allocation4], 3840
    $region25: #{tpu_custom_call.1} parent=1 // pred_fallthru
      _
    %v37 = vld [vmem:[%s0] sm:$0xf]
    %v38 = vld [vmem:[%s0 + $0x4] sm:$0x3]
    %v39 = vld [vmem:[%s0 + $0x8] sm:$0xf]
    %v40 = vld [vmem:[%s0 + $0xc] sm:$0x3]
    %v41 = vld [vmem:[%s0 + $0x10] sm:$0xf]
    %v42 = vld [vmem:[%s0 + $0x14] sm:$0x3]
    %v43 = vld [vmem:[%s0 + $0x18] sm:$0xf]
    %v44 = vld [vmem:[%s0 + $0x1c] sm:$0x3]
    %v45 = vld [vmem:[%s0 + $0x20] sm:$0xf]
    %v46 = vld [vmem:[%s0 + $0x24] sm:$0x3]
    %v47 = vld [vmem:[%s0 + $0x28] sm:$0xf]
    %v48 = vld [vmem:[%s0 + $0x2c] sm:$0x3]
    %v49 = vld [vmem:[%s0 + $0x30] sm:$0xf]
    %v50 = vld [vmem:[%s0 + $0x34] sm:$0x3]
    %v51 = vld [vmem:[%s0 + $0x38] sm:$0xf]
    %v52 = vld [vmem:[%s0 + $0x3c] sm:$0x3]
    %v69 = vunpack.c.l.b16 %v37
    %v70 = vunpack.c.l.b16 %v38
    %v71 = vunpack.c.l.b16 %v39
    %v72 = vunpack.c.l.b16 %v40
    %v73 = vunpack.c.l.b16 %v41
    %v74 = vunpack.c.l.b16 %v42
    %v75 = vunpack.c.l.b16 %v43
    %v76 = vunpack.c.l.b16 %v44
    %v77 = vunpack.c.l.b16 %v45
    %v78 = vunpack.c.l.b16 %v46
    %v79 = vunpack.c.l.b16 %v47
    %v80 = vunpack.c.l.b16 %v48
    %v81 = vunpack.c.l.b16 %v49
    %v82 = vunpack.c.l.b16 %v50
    %v83 = vunpack.c.l.b16 %v51
    %v84 = vunpack.c.l.b16 %v52
    %v85 = vpack.c.b16 %v70, %v69
    %v86 = vpack.c.b16 %v72, %v71
    %v87 = vpack.c.b16 %v74, %v73
    %v88 = vpack.c.b16 %v76, %v75
    %v89 = vpack.c.b16 %v78, %v77
    %v90 = vpack.c.b16 %v80, %v79
    %v91 = vpack.c.b16 %v82, %v81
    %v92 = vpack.c.b16 %v84, %v83
    %v94 = vshrl.u32 %v85, 16
    %v96 = vshll.u32 %v85, 16
    %v98 = vrot.slane %v96, 1
    %v99 = vor.u32 %v94, %v98
    %v101 = vshrl.u32 %v86, 16
    %v103 = vshll.u32 %v86, 16
    %v105 = vrot.slane %v103, 1
    %v106 = vor.u32 %v101, %v105
    %v108 = vshrl.u32 %v87, 16
    %v110 = vshll.u32 %v87, 16
    %v112 = vrot.slane %v110, 1
    %v113 = vor.u32 %v108, %v112
    %v115 = vshrl.u32 %v88, 16
    %v117 = vshll.u32 %v88, 16
    %v119 = vrot.slane %v117, 1
    %v120 = vor.u32 %v115, %v119
    %v122 = vshrl.u32 %v89, 16
    %v124 = vshll.u32 %v89, 16
    %v126 = vrot.slane %v124, 1
    %v127 = vor.u32 %v122, %v126
    %v129 = vshrl.u32 %v90, 16
    %v131 = vshll.u32 %v90, 16
    %v133 = vrot.slane %v131, 1
    %v134 = vor.u32 %v129, %v133
    %v136 = vshrl.u32 %v91, 16
    %v138 = vshll.u32 %v91, 16
    %v140 = vrot.slane %v138, 1
    %v141 = vor.u32 %v136, %v140
    %v143 = vshrl.u32 %v92, 16
    %v145 = vshll.u32 %v92, 16
    %v147 = vrot.slane %v145, 1
    %v148 = vor.u32 %v143, %v147
    %149 = vrot.lane.b32.xlu0 %v99, 32
    %v150 = vpop.permute.xlu0 %149
    %151 = vrot.lane.b32.xlu0 %v106, 32
    %v152 = vpop.permute.xlu0 %151
    %153 = vrot.lane.b32.xlu0 %v113, 32
    %v154 = vpop.permute.xlu0 %153
    %155 = vrot.lane.b32.xlu0 %v120, 32
    %v156 = vpop.permute.xlu0 %155
    %157 = vrot.lane.b32.xlu0 %v127, 32
    %v158 = vpop.permute.xlu0 %157
    %159 = vrot.lane.b32.xlu0 %v134, 32
    %v160 = vpop.permute.xlu0 %159
    %161 = vrot.lane.b32.xlu0 %v141, 32
    %v162 = vpop.permute.xlu0 %161
    %163 = vrot.lane.b32.xlu0 %v148, 32
    %v164 = vpop.permute.xlu0 %163
    %v165 = vrot.slane %v85, 1
    %v166 = vrot.slane %v86, 1
    %v167 = vrot.slane %v87, 1
    %v168 = vrot.slane %v88, 1
    %v169 = vrot.slane %v89, 1
    %v170 = vrot.slane %v90, 1
    %v171 = vrot.slane %v91, 1
    %v172 = vrot.slane %v92, 1
    %173 = vrot.lane.b32.xlu0 %v165, 64
    %v174 = vpop.permute.xlu0 %173
    %175 = vrot.lane.b32.xlu0 %v166, 64
    %v176 = vpop.permute.xlu0 %175
    %177 = vrot.lane.b32.xlu0 %v167, 64
    %v178 = vpop.permute.xlu0 %177
    %179 = vrot.lane.b32.xlu0 %v168, 64
    %v180 = vpop.permute.xlu0 %179
    %181 = vrot.lane.b32.xlu0 %v169, 64
    %v182 = vpop.permute.xlu0 %181
    %183 = vrot.lane.b32.xlu0 %v170, 64
    %v184 = vpop.permute.xlu0 %183
    %185 = vrot.lane.b32.xlu0 %v171, 64
    %v186 = vpop.permute.xlu0 %185
    %187 = vrot.lane.b32.xlu0 %v172, 64
    %v188 = vpop.permute.xlu0 %187
    %v189 = vrot.slane %v94, 1
    %v190 = vrot.slane %v96, 2
    %v191 = vor.u32 %v189, %v190
    %v192 = vrot.slane %v101, 1
    %v193 = vrot.slane %v103, 2
    %v194 = vor.u32 %v192, %v193
    %v195 = vrot.slane %v108, 1
    %v196 = vrot.slane %v110, 2
    %v197 = vor.u32 %v195, %v196
    %v198 = vrot.slane %v115, 1
    %v199 = vrot.slane %v117, 2
    %v200 = vor.u32 %v198, %v199
    %v201 = vrot.slane %v122, 1
    %v202 = vrot.slane %v124, 2
    %v203 = vor.u32 %v201, %v202
    %v204 = vrot.slane %v129, 1
    %v205 = vrot.slane %v131, 2
    %v206 = vor.u32 %v204, %v205
    %v207 = vrot.slane %v136, 1
    %v208 = vrot.slane %v138, 2
    %v209 = vor.u32 %v207, %v208
    %v210 = vrot.slane %v143, 1
    %v211 = vrot.slane %v145, 2
    %v212 = vor.u32 %v210, %v211
    %213 = vrot.lane.b32.xlu0 %v191, 96
    %v214 = vpop.permute.xlu0 %213
    %215 = vrot.lane.b32.xlu0 %v194, 96
    %v216 = vpop.permute.xlu0 %215
    %217 = vrot.lane.b32.xlu0 %v197, 96
    %v218 = vpop.permute.xlu0 %217
    %219 = vrot.lane.b32.xlu0 %v200, 96
    %v220 = vpop.permute.xlu0 %219
    %221 = vrot.lane.b32.xlu0 %v203, 96
    %v222 = vpop.permute.xlu0 %221
    %223 = vrot.lane.b32.xlu0 %v206, 96
    %v224 = vpop.permute.xlu0 %223
    %225 = vrot.lane.b32.xlu0 %v209, 96
    %v226 = vpop.permute.xlu0 %225
    %227 = vrot.lane.b32.xlu0 %v212, 96
    %v228 = vpop.permute.xlu0 %227
    %v229 = vrot.slane %v85, 2
    %v230 = vrot.slane %v86, 2
    %v231 = vrot.slane %v87, 2
    %v232 = vrot.slane %v88, 2
    %v233 = vrot.slane %v89, 2
    %v234 = vrot.slane %v90, 2
    %v235 = vrot.slane %v91, 2
    %v236 = vrot.slane %v92, 2
    %vm237 = vcmask 261120
    %v240 = vsel %vm237, %v37, %v150
    %v243 = vsel %vm237, %v39, %v152
    %v246 = vsel %vm237, %v41, %v154
    %v249 = vsel %vm237, %v43, %v156
    %v252 = vsel %vm237, %v45, %v158
    %v255 = vsel %vm237, %v47, %v160
    %v258 = vsel %vm237, %v49, %v162
    %v261 = vsel %vm237, %v51, %v164
    %vm262 = vcmask 523264
    %v264 = vsel %vm262, %v240, %v174
    %v266 = vsel %vm262, %v243, %v176
    %v268 = vsel %vm262, %v246, %v178
    %v270 = vsel %vm262, %v249, %v180
    %v272 = vsel %vm262, %v252, %v182
    %v274 = vsel %vm262, %v255, %v184
    %v276 = vsel %vm262, %v258, %v186
    %v278 = vsel %vm262, %v261, %v188
    %vm279 = vcmask 785408
    %v281 = vsel %vm279, %v264, %v214
    %v283 = vsel %vm279, %v266, %v216
    %v285 = vsel %vm279, %v268, %v218
    %v287 = vsel %vm279, %v270, %v220
    %v289 = vsel %vm279, %v272, %v222
    %v291 = vsel %vm279, %v274, %v224
    %v293 = vsel %vm279, %v276, %v226
    %v295 = vsel %vm279, %v278, %v228
    %v304 = vunpack.c.l.b16 %v281
    %v305 = vunpack.c.l.b16 %v229
    %v306 = vunpack.c.l.b16 %v283
    %v307 = vunpack.c.l.b16 %v230
    %v308 = vunpack.c.l.b16 %v285
    %v309 = vunpack.c.l.b16 %v231
    %v310 = vunpack.c.l.b16 %v287
    %v311 = vunpack.c.l.b16 %v232
    %v312 = vunpack.c.l.b16 %v289
    %v313 = vunpack.c.l.b16 %v233
    %v314 = vunpack.c.l.b16 %v291
    %v315 = vunpack.c.l.b16 %v234
    %v316 = vunpack.c.l.b16 %v293
    %v317 = vunpack.c.l.b16 %v235
    %v318 = vunpack.c.l.b16 %v295
    %v319 = vunpack.c.l.b16 %v236
    %v320 = vld [vmem:[#allocation3] sm:$0xff]
    %v321 = vld [vmem:[#allocation3 + $0x8] sm:$0xf]
    %v322 = vld [vmem:[#allocation3 + $0xc] sm:$0xff]
    %v323 = vld [vmem:[#allocation3 + $0x14] sm:$0xf]
    %v324 = vld [vmem:[#allocation3 + $0x18] sm:$0xff]
    %v325 = vld [vmem:[#allocation3 + $0x20] sm:$0xf]
    %v326 = vld [vmem:[#allocation3 + $0x24] sm:$0xff]
    %v327 = vld [vmem:[#allocation3 + $0x2c] sm:$0xf]
    %v328 = vld [vmem:[#allocation3 + $0x30] sm:$0xff]
    %v329 = vld [vmem:[#allocation3 + $0x38] sm:$0xf]
    %v330 = vld [vmem:[#allocation3 + $0x3c] sm:$0xff]
    %v331 = vld [vmem:[#allocation3 + $0x44] sm:$0xf]
    %v332 = vld [vmem:[#allocation3 + $0x48] sm:$0xff]
    %v333 = vld [vmem:[#allocation3 + $0x50] sm:$0xf]
    %v334 = vld [vmem:[#allocation3 + $0x54] sm:$0xff]
    %v335 = vld [vmem:[#allocation3 + $0x5c] sm:$0xf]
    %v336 = vld [vmem:[#allocation3 + $0x60] sm:$0xff]
    %v337 = vld [vmem:[#allocation3 + $0x68] sm:$0xf]
    %v338 = vld [vmem:[#allocation3 + $0x6c] sm:$0xff]
    %v339 = vld [vmem:[#allocation3 + $0x74] sm:$0xf]
    %v340 = vld [vmem:[#allocation3 + $0x78] sm:$0xff]
    %v341 = vld [vmem:[#allocation3 + $0x80] sm:$0xf]
    %v342 = vld [vmem:[#allocation3 + $0x84] sm:$0xff]
    %v343 = vld [vmem:[#allocation3 + $0x8c] sm:$0xf]
    %v344 = vld [vmem:[#allocation3 + $0x90] sm:$0xff]
    %v345 = vld [vmem:[#allocation3 + $0x98] sm:$0xf]
    %v346 = vld [vmem:[#allocation3 + $0x9c] sm:$0xff]
    %v347 = vld [vmem:[#allocation3 + $0xa4] sm:$0xf]
    %v348 = vld [vmem:[#allocation3 + $0xa8] sm:$0xff]
    %v349 = vld [vmem:[#allocation3 + $0xb0] sm:$0xf]
    %v350 = vld [vmem:[#allocation3 + $0xb4] sm:$0xff]
    %v351 = vld [vmem:[#allocation3 + $0xbc] sm:$0xf]
    %v352 = vld [vmem:[#allocation3 + $0xc0] sm:$0xff]
    %v353 = vld [vmem:[#allocation3 + $0xc8] sm:$0xf]
    %v354 = vld [vmem:[#allocation3 + $0xcc] sm:$0xff]
    %v355 = vld [vmem:[#allocation3 + $0xd4] sm:$0xf]
    %v356 = vld [vmem:[#allocation3 + $0xd8] sm:$0xff]
    %v357 = vld [vmem:[#allocation3 + $0xe0] sm:$0xf]
    %v358 = vld [vmem:[#allocation3 + $0xe4] sm:$0xff]
    %v359 = vld [vmem:[#allocation3 + $0xec] sm:$0xf]
    %v360 = vpack.c.b16 %v306, %v304
    %v361 = vpack.c.b16 %v307, %v305
    %v362 = vpack.c.b16 %v310, %v308
    %v363 = vpack.c.b16 %v311, %v309
    %v364 = vpack.c.b16 %v314, %v312
    %v365 = vpack.c.b16 %v315, %v313
    %v366 = vpack.c.b16 %v318, %v316
    %v367 = vpack.c.b16 %v319, %v317
    %v412 = vunpack.c.l.b16 %v320
    %v413 = vunpack.c.h.b16 %v320
    %v414 = vunpack.c.l.b16 %v321
    %v415 = vunpack.c.l.b16 %v322
    %v416 = vunpack.c.h.b16 %v322
    %v417 = vunpack.c.l.b16 %v323
    %v418 = vunpack.c.l.b16 %v324
    %v419 = vunpack.c.h.b16 %v324
    %v420 = vunpack.c.l.b16 %v325
    %v421 = vunpack.c.l.b16 %v326
    %v422 = vunpack.c.h.b16 %v326
    %v423 = vunpack.c.l.b16 %v327
    %v424 = vunpack.c.l.b16 %v328
    %v425 = vunpack.c.h.b16 %v328
    %v426 = vunpack.c.l.b16 %v329
    %v427 = vunpack.c.l.b16 %v330
    %v428 = vunpack.c.h.b16 %v330
    %v429 = vunpack.c.l.b16 %v331
    %v430 = vunpack.c.l.b16 %v332
    %v431 = vunpack.c.h.b16 %v332
    %v432 = vunpack.c.l.b16 %v333
    %v433 = vunpack.c.l.b16 %v334
    %v434 = vunpack.c.h.b16 %v334
    %v435 = vunpack.c.l.b16 %v335
    %v436 = vunpack.c.l.b16 %v336
    %v437 = vunpack.c.h.b16 %v336
    %v438 = vunpack.c.l.b16 %v337
    %v439 = vunpack.c.l.b16 %v338
    %v440 = vunpack.c.h.b16 %v338
    %v441 = vunpack.c.l.b16 %v339
    %v442 = vunpack.c.l.b16 %v340
    %v443 = vunpack.c.h.b16 %v340
    %v444 = vunpack.c.l.b16 %v341
    %v445 = vunpack.c.l.b16 %v342
    %v446 = vunpack.c.h.b16 %v342
    %v447 = vunpack.c.l.b16 %v343
    %v448 = vunpack.c.l.b16 %v344
    %v449 = vunpack.c.h.b16 %v344
    %v450 = vunpack.c.l.b16 %v345
    %v451 = vunpack.c.l.b16 %v346
    %v452 = vunpack.c.h.b16 %v346
    %v453 = vunpack.c.l.b16 %v347
    %v454 = vunpack.c.l.b16 %v348
    %v455 = vunpack.c.h.b16 %v348
    %v456 = vunpack.c.l.b16 %v349
    %v457 = vunpack.c.l.b16 %v350
    %v458 = vunpack.c.h.b16 %v350
    %v459 = vunpack.c.l.b16 %v351
    %v460 = vunpack.c.l.b16 %v352
    %v461 = vunpack.c.h.b16 %v352
    %v462 = vunpack.c.l.b16 %v353
    %v463 = vunpack.c.l.b16 %v354
    %v464 = vunpack.c.h.b16 %v354
    %v465 = vunpack.c.l.b16 %v355
    %v466 = vunpack.c.l.b16 %v356
    %v467 = vunpack.c.h.b16 %v356
    %v468 = vunpack.c.l.b16 %v357
    %v469 = vunpack.c.l.b16 %v358
    %v470 = vunpack.c.h.b16 %v358
    %v471 = vunpack.c.l.b16 %v359
    %v472 = vpack.c.b16 %v415, %v412
    %v473 = vpack.c.b16 %v416, %v413
    %v474 = vpack.c.b16 %v417, %v414
    %v475 = vpack.c.b16 %v421, %v418
    %v476 = vpack.c.b16 %v422, %v419
    %v477 = vpack.c.b16 %v423, %v420
    %v478 = vpack.c.b16 %v427, %v424
    %v479 = vpack.c.b16 %v428, %v425
    %v480 = vpack.c.b16 %v429, %v426
    %v481 = vpack.c.b16 %v433, %v430
    %v482 = vpack.c.b16 %v434, %v431
    %v483 = vpack.c.b16 %v435, %v432
    %v484 = vpack.c.b16 %v439, %v436
    %v485 = vpack.c.b16 %v440, %v437
    %v486 = vpack.c.b16 %v441, %v438
    %v487 = vpack.c.b16 %v445, %v442
    %v488 = vpack.c.b16 %v446, %v443
    %v489 = vpack.c.b16 %v447, %v444
    %v490 = vpack.c.b16 %v451, %v448
    %v491 = vpack.c.b16 %v452, %v449
    %v492 = vpack.c.b16 %v453, %v450
    %v493 = vpack.c.b16 %v457, %v454
    %v494 = vpack.c.b16 %v458, %v455
    %v495 = vpack.c.b16 %v459, %v456
    %v496 = vpack.c.b16 %v463, %v460
    %v497 = vpack.c.b16 %v464, %v461
    %v498 = vpack.c.b16 %v465, %v462
    %v499 = vpack.c.b16 %v469, %v466
    %v500 = vpack.c.b16 %v470, %v467
    %v501 = vpack.c.b16 %v471, %v468
    %v533 = vsel %vm237, %v361, 0
    %v536 = vsel %vm237, %v363, 0
    %v539 = vsel %vm237, %v365, 0
    %v542 = vsel %vm237, %v367, 0
    %544 = vmatprep.subr.bf16.mxu0 %v473
    %545 = vmatpush1.bf16.msra.mxu0 %v472
    %546 = vmatprep.subr.bf16.mxu0 %v476
    %547 = vmatpush1.bf16.msra.mxu0 %v475
    %548 = vmatprep.subr.bf16.mxu0 %v479
    %549 = vmatpush1.bf16.msra.mxu0 %v478
    %550 = vmatprep.subr.bf16.mxu0 %v482
    %551 = vmatpush1.bf16.msra.mxu0 %v481
    %552 = vmatprep.subr.bf16.mxu0 %v485
    %553 = vmatpush1.bf16.msra.mxu0 %v484
    %554 = vmatprep.subr.bf16.mxu0 %v488
    %555 = vmatpush1.bf16.msra.mxu0 %v487
    %556 = vmatprep.subr.bf16.mxu0 %v491
    %557 = vmatpush1.bf16.msra.mxu0 %v490
    %558 = vmatprep.subr.bf16.mxu0 %v494
    %559 = vmatpush1.bf16.msra.mxu0 %v493
    %560 = vmatprep.subr.bf16.mxu0 %v497
    %561 = vmatpush1.bf16.msra.mxu0 %v496
    %562 = vmatprep.subr.bf16.mxu0 %v500
    %563 = vmatpush1.bf16.msra.mxu0 %v499
    %564 = vmatprep.subr.bf16.mxu0 0
    %565 = vmatpush1.bf16.msra.mxu0 0
    %566 = vmatprep.subr.bf16.mxu0 0
    %567 = vmatpush1.bf16.msra.mxu0 0
    %568 = vmatprep.subr.bf16.mxu0 0
    %569 = vmatpush1.bf16.msra.mxu0 0
    %570 = vmatprep.subr.bf16.mxu0 0
    %571 = vmatpush1.bf16.msra.mxu0 0
    %572 = vmatprep.subr.bf16.mxu0 0
    %573 = vmatpush1.bf16.msra.mxu0 0
    %574 = vmatprep.subr.bf16.mxu0 0
    %575 = vmatpush1.bf16.msra.mxu0 0
    %576 = vmatprep.mubr.bf16.mxu0 %v533
    %577 = vmatmul.mubr.bf16.gmra.mrb[0].mxu0 %v360
    %v578 = vpop.f32.mrb[0].mxu0
    %v579 = vadd.f32 0.0, %v578
    %v580 = vpop.f32.mrb[0].mxu0
    %v581 = vadd.f32 0.0, %v580
    %v582 = vpop.f32.mrb[0].mxu0
    %v583 = vadd.f32 0.0, %v582
    %v584 = vpop.f32.mrb[0].mxu0
    %v585 = vadd.f32 0.0, %v584
    %586 = vmatprep.mubr.bf16.mxu0 %v536
    %587 = vmatmul.mubr.bf16.gmra.mrb[0].mxu0 %v362
    %v588 = vpop.f32.mrb[0].mxu0
    %v589 = vadd.f32 0.0, %v588
    %v590 = vpop.f32.mrb[0].mxu0
    %v591 = vadd.f32 0.0, %v590
    %v592 = vpop.f32.mrb[0].mxu0
    %v593 = vadd.f32 0.0, %v592
    %v594 = vpop.f32.mrb[0].mxu0
    %v595 = vadd.f32 0.0, %v594
    %596 = vmatprep.mubr.bf16.mxu0 %v539
    %597 = vmatmul.mubr.bf16.gmra.mrb[0].mxu0 %v364
    %v598 = vpop.f32.mrb[0].mxu0
    %v599 = vadd.f32 0.0, %v598
    %v600 = vpop.f32.mrb[0].mxu0
    %v601 = vadd.f32 0.0, %v600
    %v602 = vpop.f32.mrb[0].mxu0
    %v603 = vadd.f32 0.0, %v602
    %v604 = vpop.f32.mrb[0].mxu0
    %v605 = vadd.f32 0.0, %v604
    %606 = vmatprep.mubr.bf16.mxu0 %v542
    %607 = vmatmul.mubr.bf16.gmra.mrb[0].mxu0 %v366
    %v608 = vpop.f32.mrb[0].mxu0
    %v609 = vadd.f32 0.0, %v608
    %v610 = vpop.f32.mrb[0].mxu0
    %v611 = vadd.f32 0.0, %v610
    %v612 = vpop.f32.mrb[0].mxu0
    %v613 = vadd.f32 0.0, %v612
    %v614 = vpop.f32.mrb[0].mxu0
    %v615 = vadd.f32 0.0, %v614
    %616 = vdwg.mxu0
    %617 = vmatprep.subr.bf16.mxu0 0
    %618 = vmatpush1.bf16.msra.mxu0 %v474
    %619 = vmatprep.subr.bf16.mxu0 0
    %620 = vmatpush1.bf16.msra.mxu0 %v477
    %621 = vmatprep.subr.bf16.mxu0 0
    %622 = vmatpush1.bf16.msra.mxu0 %v480
    %623 = vmatprep.subr.bf16.mxu0 0
    %624 = vmatpush1.bf16.msra.mxu0 %v483
    %625 = vmatprep.subr.bf16.mxu0 0
    %626 = vmatpush1.bf16.msra.mxu0 %v486
    %627 = vmatprep.subr.bf16.mxu0 0
    %628 = vmatpush1.bf16.msra.mxu0 %v489
    %629 = vmatprep.subr.bf16.mxu0 0
    %630 = vmatpush1.bf16.msra.mxu0 %v492
    %631 = vmatprep.subr.bf16.mxu0 0
    %632 = vmatpush1.bf16.msra.mxu0 %v495
    %633 = vmatprep.subr.bf16.mxu0 0
    %634 = vmatpush1.bf16.msra.mxu0 %v498
    %635 = vmatprep.subr.bf16.mxu0 0
    %636 = vmatpush1.bf16.msra.mxu0 %v501
    %637 = vmatprep.subr.bf16.mxu0 0
    %638 = vmatpush1.bf16.msra.mxu0 0
    %639 = vmatprep.subr.bf16.mxu0 0
    %640 = vmatpush1.bf16.msra.mxu0 0
    %641 = vmatprep.subr.bf16.mxu0 0
    %642 = vmatpush1.bf16.msra.mxu0 0
    %643 = vmatprep.subr.bf16.mxu0 0
    %644 = vmatpush1.bf16.msra.mxu0 0
    %645 = vmatprep.subr.bf16.mxu0 0
    %646 = vmatpush1.bf16.msra.mxu0 0
    %647 = vmatprep.subr.bf16.mxu0 0
    %648 = vmatpush1.bf16.msra.mxu0 0
    %649 = vmatprep.mubr.bf16.mxu0 %v533
    %650 = vmatmul.mubr.bf16.gmra.mrb[0].mxu0 %v360
    %v651 = vpop.f32.mrb[0].mxu0
    %v652 = vadd.f32 0.0, %v651
    %v653 = vpop.f32.mrb[0].mxu0
    %v654 = vpop.f32.mrb[0].mxu0
    %v655 = vadd.f32 0.0, %v654
    %v656 = vpop.f32.mrb[0].mxu0
    %657 = vmatprep.mubr.bf16.mxu0 %v536
    %658 = vmatmul.mubr.bf16.gmra.mrb[0].mxu0 %v362
    %v659 = vpop.f32.mrb[0].mxu0
    %v660 = vadd.f32 0.0, %v659
    %v661 = vpop.f32.mrb[0].mxu0
    %v662 = vpop.f32.mrb[0].mxu0
    %v663 = vadd.f32 0.0, %v662
    %v664 = vpop.f32.mrb[0].mxu0
    %665 = vmatprep.mubr.bf16.mxu0 %v539
    %666 = vmatmul.mubr.bf16.gmra.mrb[0].mxu0 %v364
    %v667 = vpop.f32.mrb[0].mxu0
    %v668 = vadd.f32 0.0, %v667
    %v669 = vpop.f32.mrb[0].mxu0
    %v670 = vpop.f32.mrb[0].mxu0
    %v671 = vadd.f32 0.0, %v670
    %v672 = vpop.f32.mrb[0].mxu0
    %673 = vmatprep.mubr.bf16.mxu0 %v542
    %674 = vmatmul.mubr.bf16.gmra.mrb[0].mxu0 %v366
    %v675 = vpop.f32.mrb[0].mxu0
    %v676 = vadd.f32 0.0, %v675
    %v677 = vpop.f32.mrb[0].mxu0
    %v678 = vpop.f32.mrb[0].mxu0
    %v679 = vadd.f32 0.0, %v678
    %v680 = vpop.f32.mrb[0].mxu0
    %681 = vdwg.mxu0
    %v682 = vlaneseq
    %v683 = vshrl.u32 %v682, 7
    %vm684 = vcmp.lt.s32.totalorder %v683, 6
    %v685 = vsel %vm684, 1, 0
    %vm686 = vcmp.eq.s32.totalorder %v685, 1
    %v687 = vsel %vm686, %v579, -1e+30
    %v688 = vsel %vm686, %v583, -1e+30
    %v689 = vsel %vm686, %v589, -1e+30
    %v690 = vsel %vm686, %v593, -1e+30
    %v691 = vsel %vm686, %v599, -1e+30
    %v692 = vsel %vm686, %v603, -1e+30
    %v693 = vsel %vm686, %v609, -1e+30
    %v694 = vsel %vm686, %v613, -1e+30
    %v695 = vrot.slane %v687, 4
    %v696 = vmax.f32 %v687, %v695
    %v697 = vrot.slane %v696, 2
    %v698 = vmax.f32 %v696, %v697
    %v699 = vrot.slane %v698, 1
    %v700 = vmax.f32 %v698, %v699
    %v701 = vrot.slane %v688, 4
    %v702 = vmax.f32 %v688, %v701
    %v703 = vrot.slane %v702, 2
    %v704 = vmax.f32 %v702, %v703
    %v705 = vrot.slane %v704, 1
    %v706 = vmax.f32 %v704, %v705
    %v707 = vrot.slane %v689, 4
    %v708 = vmax.f32 %v689, %v707
    %v709 = vrot.slane %v708, 2
    %v710 = vmax.f32 %v708, %v709
    %v711 = vrot.slane %v710, 1
    %v712 = vmax.f32 %v710, %v711
    %v713 = vrot.slane %v690, 4
    %v714 = vmax.f32 %v690, %v713
    %v715 = vrot.slane %v714, 2
    %v716 = vmax.f32 %v714, %v715
    %v717 = vrot.slane %v716, 1
    %v718 = vmax.f32 %v716, %v717
    %v719 = vrot.slane %v691, 4
    %v720 = vmax.f32 %v691, %v719
    %v721 = vrot.slane %v720, 2
    %v722 = vmax.f32 %v720, %v721
    %v723 = vrot.slane %v722, 1
    %v724 = vmax.f32 %v722, %v723
    %v725 = vrot.slane %v692, 4
    %v726 = vmax.f32 %v692, %v725
    %v727 = vrot.slane %v726, 2
    %v728 = vmax.f32 %v726, %v727
    %v729 = vrot.slane %v728, 1
    %v730 = vmax.f32 %v728, %v729
    %v731 = vrot.slane %v693, 4
    %v732 = vmax.f32 %v693, %v731
    %v733 = vrot.slane %v732, 2
    %v734 = vmax.f32 %v732, %v733
    %v735 = vrot.slane %v734, 1
    %v736 = vmax.f32 %v734, %v735
    %v737 = vrot.slane %v694, 4
    %v738 = vmax.f32 %v694, %v737
    %v739 = vrot.slane %v738, 2
    %v740 = vmax.f32 %v738, %v739
    %v741 = vrot.slane %v740, 1
    %v742 = vmax.f32 %v740, %v741
    %v743 = vld [vmem:[%s2] sm:$0x1]
    %v744 = vlaneseq
    %v745 = vshrl.u32 %v744, 7
    %v746 = vsub.s32 0, %v745
    %v747 = vrot.slane %v743, %v746
    %v748 = vadd.f32 %v700, %v747
    %v749 = vadd.f32 %v706, %v747
    %v750 = vadd.f32 %v712, %v747
    %v751 = vadd.f32 %v718, %v747
    %v752 = vadd.f32 %v724, %v747
    %v753 = vadd.f32 %v730, %v747
    %v754 = vadd.f32 %v736, %v747
    %v755 = vadd.f32 %v742, %v747
    %v756 = vmax.f32 %v748, 0.0
    %v757 = vmax.f32 %v749, 0.0
    %v758 = vmax.f32 %v750, 0.0
    %v759 = vmax.f32 %v751, 0.0
    %v760 = vmax.f32 %v752, 0.0
    %v761 = vmax.f32 %v753, 0.0
    %v762 = vmax.f32 %v754, 0.0
    %v763 = vmax.f32 %v755, 0.0
    %v764 = vld [vmem:[%s3] sm:$0x1]
    %v765 = vlaneseq
    %v766 = vshrl.u32 %v765, 7
    %v767 = vsub.s32 0, %v766
    %v768 = vrot.slane %v764, %v767
    %v769 = vmul.f32 %v756, %v768
    %v770 = vmul.f32 %v757, %v768
    %v771 = vmul.f32 %v758, %v768
    %v772 = vmul.f32 %v759, %v768
    %v773 = vmul.f32 %v760, %v768
    %v774 = vmul.f32 %v761, %v768
    %v775 = vmul.f32 %v762, %v768
    %v776 = vmul.f32 %v763, %v768
    %v777 = vadd.f32 %v769, 0.0
    %v778 = vadd.f32 %v770, 0.0
    %v779 = vadd.f32 %v771, 0.0
    %v780 = vadd.f32 %v772, 0.0
    %v781 = vadd.f32 %v773, 0.0
    %v782 = vadd.f32 %v774, 0.0
    %v783 = vadd.f32 %v775, 0.0
    %v784 = vadd.f32 %v776, 0.0
    %vm785 = vcmp.lt.s32.totalorder %v683, 5
    %v786 = vsel %vm785, 1, 0
    %vm787 = vcmp.eq.s32.totalorder %v786, 1
    %v788 = vsel %vm787, %v581, -1e+30
    %v789 = vsel %vm787, %v585, -1e+30
    %v790 = vsel %vm787, %v591, -1e+30
    %v791 = vsel %vm787, %v595, -1e+30
    %v792 = vsel %vm787, %v601, -1e+30
    %v793 = vsel %vm787, %v605, -1e+30
    %v794 = vsel %vm787, %v611, -1e+30
    %v795 = vsel %vm787, %v615, -1e+30
    %v796 = vrot.slane %v788, 4
    %v797 = vmax.f32 %v788, %v796
    %v798 = vrot.slane %v797, 2
    %v799 = vmax.f32 %v797, %v798
    %v800 = vrot.slane %v799, 1
    %v801 = vmax.f32 %v799, %v800
    %v802 = vrot.slane %v789, 4
    %v803 = vmax.f32 %v789, %v802
    %v804 = vrot.slane %v803, 2
    %v805 = vmax.f32 %v803, %v804
    %v806 = vrot.slane %v805, 1
    %v807 = vmax.f32 %v805, %v806
    %v808 = vrot.slane %v790, 4
    %v809 = vmax.f32 %v790, %v808
    %v810 = vrot.slane %v809, 2
    %v811 = vmax.f32 %v809, %v810
    %v812 = vrot.slane %v811, 1
    %v813 = vmax.f32 %v811, %v812
    %v814 = vrot.slane %v791, 4
    %v815 = vmax.f32 %v791, %v814
    %v816 = vrot.slane %v815, 2
    %v817 = vmax.f32 %v815, %v816
    %v818 = vrot.slane %v817, 1
    %v819 = vmax.f32 %v817, %v818
    %v820 = vrot.slane %v792, 4
    %v821 = vmax.f32 %v792, %v820
    %v822 = vrot.slane %v821, 2
    %v823 = vmax.f32 %v821, %v822
    %v824 = vrot.slane %v823, 1
    %v825 = vmax.f32 %v823, %v824
    %v826 = vrot.slane %v793, 4
    %v827 = vmax.f32 %v793, %v826
    %v828 = vrot.slane %v827, 2
    %v829 = vmax.f32 %v827, %v828
    %v830 = vrot.slane %v829, 1
    %v831 = vmax.f32 %v829, %v830
    %v832 = vrot.slane %v794, 4
    %v833 = vmax.f32 %v794, %v832
    %v834 = vrot.slane %v833, 2
    %v835 = vmax.f32 %v833, %v834
    %v836 = vrot.slane %v835, 1
    %v837 = vmax.f32 %v835, %v836
    %v838 = vrot.slane %v795, 4
    %v839 = vmax.f32 %v795, %v838
    %v840 = vrot.slane %v839, 2
    %v841 = vmax.f32 %v839, %v840
    %v842 = vrot.slane %v841, 1
    %v843 = vmax.f32 %v841, %v842
    %v844 = vld [vmem:[%s2 + $0x1] sm:$0x1]
    %v845 = vlaneseq
    %v846 = vshrl.u32 %v845, 7
    %v847 = vsub.s32 0, %v846
    %v848 = vrot.slane %v844, %v847
    %v849 = vadd.f32 %v801, %v848
    %v850 = vadd.f32 %v807, %v848
    %v851 = vadd.f32 %v813, %v848
    %v852 = vadd.f32 %v819, %v848
    %v853 = vadd.f32 %v825, %v848
    %v854 = vadd.f32 %v831, %v848
    %v855 = vadd.f32 %v837, %v848
    %v856 = vadd.f32 %v843, %v848
    %v857 = vmax.f32 %v849, 0.0
    %v858 = vmax.f32 %v850, 0.0
    %v859 = vmax.f32 %v851, 0.0
    %v860 = vmax.f32 %v852, 0.0
    %v861 = vmax.f32 %v853, 0.0
    %v862 = vmax.f32 %v854, 0.0
    %v863 = vmax.f32 %v855, 0.0
    %v864 = vmax.f32 %v856, 0.0
    %v865 = vld [vmem:[%s3 + $0x1] sm:$0x1]
    %v866 = vlaneseq
    %v867 = vshrl.u32 %v866, 7
    %v868 = vsub.s32 0, %v867
    %v869 = vrot.slane %v865, %v868
    %v870 = vmul.f32 %v857, %v869
    %v871 = vmul.f32 %v858, %v869
    %v872 = vmul.f32 %v859, %v869
    %v873 = vmul.f32 %v860, %v869
    %v874 = vmul.f32 %v861, %v869
    %v875 = vmul.f32 %v862, %v869
    %v876 = vmul.f32 %v863, %v869
    %v877 = vmul.f32 %v864, %v869
    %v878 = vadd.f32 %v777, %v870
    %v879 = vadd.f32 %v778, %v871
    %v880 = vadd.f32 %v779, %v872
    %v881 = vadd.f32 %v780, %v873
    %v882 = vadd.f32 %v781, %v874
    %v883 = vadd.f32 %v782, %v875
    %v884 = vadd.f32 %v783, %v876
    %v885 = vadd.f32 %v784, %v877
    %vm886 = vcmp.lt.s32.totalorder %v683, 4
    %v887 = vsel %vm886, 1, 0
    %vm888 = vcmp.eq.s32.totalorder %v887, 1
    %v889 = vsel %vm888, %v652, -1e+30
    %v890 = vsel %vm888, %v655, -1e+30
    %v891 = vsel %vm888, %v660, -1e+30
    %v892 = vsel %vm888, %v663, -1e+30
    %v893 = vsel %vm888, %v668, -1e+30
    %v894 = vsel %vm888, %v671, -1e+30
    %v895 = vsel %vm888, %v676, -1e+30
    %v896 = vsel %vm888, %v679, -1e+30
    %v897 = vrot.slane %v889, 4
    %v898 = vmax.f32 %v889, %v897
    %v899 = vrot.slane %v898, 2
    %v900 = vmax.f32 %v898, %v899
    %v901 = vrot.slane %v900, 1
    %v902 = vmax.f32 %v900, %v901
    %v903 = vrot.slane %v890, 4
    %v904 = vmax.f32 %v890, %v903
    %v905 = vrot.slane %v904, 2
    %v906 = vmax.f32 %v904, %v905
    %v907 = vrot.slane %v906, 1
    %v908 = vmax.f32 %v906, %v907
    %v909 = vrot.slane %v891, 4
    %v910 = vmax.f32 %v891, %v909
    %v911 = vrot.slane %v910, 2
    %v912 = vmax.f32 %v910, %v911
    %v913 = vrot.slane %v912, 1
    %v914 = vmax.f32 %v912, %v913
    %v915 = vrot.slane %v892, 4
    %v916 = vmax.f32 %v892, %v915
    %v917 = vrot.slane %v916, 2
    %v918 = vmax.f32 %v916, %v917
    %v919 = vrot.slane %v918, 1
    %v920 = vmax.f32 %v918, %v919
    %v921 = vrot.slane %v893, 4
    %v922 = vmax.f32 %v893, %v921
    %v923 = vrot.slane %v922, 2
    %v924 = vmax.f32 %v922, %v923
    %v925 = vrot.slane %v924, 1
    %v926 = vmax.f32 %v924, %v925
    %v927 = vrot.slane %v894, 4
    %v928 = vmax.f32 %v894, %v927
    %v929 = vrot.slane %v928, 2
    %v930 = vmax.f32 %v928, %v929
    %v931 = vrot.slane %v930, 1
    %v932 = vmax.f32 %v930, %v931
    %v933 = vrot.slane %v895, 4
    %v934 = vmax.f32 %v895, %v933
    %v935 = vrot.slane %v934, 2
    %v936 = vmax.f32 %v934, %v935
    %v937 = vrot.slane %v936, 1
    %v938 = vmax.f32 %v936, %v937
    %v939 = vrot.slane %v896, 4
    %v940 = vmax.f32 %v896, %v939
    %v941 = vrot.slane %v940, 2
    %v942 = vmax.f32 %v940, %v941
    %v943 = vrot.slane %v942, 1
    %v944 = vmax.f32 %v942, %v943
    %v945 = vld [vmem:[%s2 + $0x2] sm:$0x1]
    %v946 = vlaneseq
    %v947 = vshrl.u32 %v946, 7
    %v948 = vsub.s32 0, %v947
    %v949 = vrot.slane %v945, %v948
    %v950 = vadd.f32 %v902, %v949
    %v951 = vadd.f32 %v908, %v949
    %v952 = vadd.f32 %v914, %v949
    %v953 = vadd.f32 %v920, %v949
    %v954 = vadd.f32 %v926, %v949
    %v955 = vadd.f32 %v932, %v949
    %v956 = vadd.f32 %v938, %v949
    %v957 = vadd.f32 %v944, %v949
    %v958 = vmax.f32 %v950, 0.0
    %v959 = vmax.f32 %v951, 0.0
    %v960 = vmax.f32 %v952, 0.0
    %v961 = vmax.f32 %v953, 0.0
    %v962 = vmax.f32 %v954, 0.0
    %v963 = vmax.f32 %v955, 0.0
    %v964 = vmax.f32 %v956, 0.0
    %v965 = vmax.f32 %v957, 0.0
    %v966 = vld [vmem:[%s3 + $0x2] sm:$0x1]
    %v967 = vlaneseq
    %v968 = vshrl.u32 %v967, 7
    %v969 = vsub.s32 0, %v968
    %v970 = vrot.slane %v966, %v969
    %v971 = vmul.f32 %v958, %v970
    %v972 = vmul.f32 %v959, %v970
    %v973 = vmul.f32 %v960, %v970
    %v974 = vmul.f32 %v961, %v970
    %v975 = vmul.f32 %v962, %v970
    %v976 = vmul.f32 %v963, %v970
    %v977 = vmul.f32 %v964, %v970
    %v978 = vmul.f32 %v965, %v970
    %v979 = vadd.f32 %v878, %v971
    %v980 = vadd.f32 %v879, %v972
    %v981 = vadd.f32 %v880, %v973
    %v982 = vadd.f32 %v881, %v974
    %v983 = vadd.f32 %v882, %v975
    %v984 = vadd.f32 %v883, %v976
    %v985 = vadd.f32 %v884, %v977
    %v986 = vadd.f32 %v885, %v978
    %v995 = vrot.slane %v980, 7
    %vm996 = vcmask 1041409
    %v997 = vsel %vm996, %v995, %v979
    %v998 = vrot.slane %v981, 6
    %vm999 = vcmask 1042434
    %v1000 = vsel %vm999, %v998, %v997
    %v1001 = vrot.slane %v982, 5
    %vm1002 = vcmask 1043459
    %v1003 = vsel %vm1002, %v1001, %v1000
    %v1004 = vrot.slane %v983, 4
    %vm1005 = vcmask 1044484
    %v1006 = vsel %vm1005, %v1004, %v1003
    %v1007 = vrot.slane %v984, 3
    %vm1008 = vcmask 1045509
    %v1009 = vsel %vm1008, %v1007, %v1006
    %v1010 = vrot.slane %v985, 2
    %vm1011 = vcmask 1046534
    %v1012 = vsel %vm1011, %v1010, %v1009
    %v1013 = vrot.slane %v986, 1
    %vm1014 = vcmask 1047559
    %v1015 = vsel %vm1014, %v1013, %v1012
    %1017 = vadd.xlane.f32.xlu0 %v1015
    %v1018 = vpop.xlane.xlu0 %1017
    %v1019 = vld [vmem:[#allocation2] sm:$0x1]
    %v1021 = vlaneseq
    %v1022 = vshrl.u32 %v1021, 7
    %v1023 = vsub.s32 0, %v1022
    %v1024 = vrot.slane %v1019, %v1023
    %v1026 = vadd.f32 %v1018, %v1024
    %v1027 = vxor.u32 %v1026, 2147483648
    %v1028 = vmul.f32 %v1027, 1.442695
    %v1029 = vpow.pop %v1028
    %v1030 = vadd.f32 %v1029, 1.0
    %v1031 = vrcp.pop %v1030
    %v1032 = vmul.f32 1.0, %v1031
    %vm1033 = vcmask 7168
    %1034 = vst.msk [vmem:[%s5] sm:$0xff] %vm1033, %v1032
    // Predicated region
    $region26: #{tpu_custom_call.1} parent=1 // pred_check
      _
    $region27: #{tpu_custom_call.1} parent=1 // pred_check_branch
      %1036 = sbr.rel (0) target = $region29
    $region28: #{tpu_custom_call.1} parent=1 // pred_region
      _
    $region29: #{tpu_custom_call.1} parent=1 // pred_fallthru
      _
    // Predicated region
    $region30: #{tpu_custom_call.1} parent=1 // pred_check
      _
    $region31: #{tpu_custom_call.1} parent=1 // pred_check_branch
      %1038 = sbr.rel (0) target = $region33
    $region32: #{tpu_custom_call.1} parent=1 // pred_region
      _
    $region33: #{tpu_custom_call.1} parent=1 // pred_fallthru
      _
    %1039 = vsyncpa [#allocation4], 1

</llo_original>
